<compile_context>
chip_gen: v5e
topology: v5e:2x2
jax: 0.10.0
libtpu: 0.0.40
codegen_flags: <defaults>
</compile_context>

<pallas_src>
import functools

import jax
import jax.numpy as jnp
from jax.experimental import pallas as pl
from jax.experimental.pallas import tpu as pltpu

_LOG2E = 1.4426950408889634


# --------------------------------------------------------------------------
# Pass 1: K/V projection (once per kv token), head-major bf16 output.
# --------------------------------------------------------------------------
def _kv_proj_kernel(y_ref, wk_ref, wv_ref, k_ref, v_ref, *, num_heads, head_dim):
    H, D = num_heads, head_dim
    y = y_ref[0]                                                        # (tkv, C) bf16
    k = jnp.dot(y, wk_ref[...], preferred_element_type=jnp.float32)    # (tkv, C)
    v = jnp.dot(y, wv_ref[...], preferred_element_type=jnp.float32)    # (tkv, C)
    # Head-major relayout happens exactly once per kv token (hoisted out of
    # the flash inner loop).
    for h in range(H):
        k_ref[0, h] = k[:, h * D:(h + 1) * D].astype(jnp.bfloat16)
        v_ref[0, h] = v[:, h * D:(h + 1) * D].astype(jnp.bfloat16)


# --------------------------------------------------------------------------
# Pass 2: flash attention (q projection + online softmax + output projection).
# Grid = (batch, q-tile, kv-tile); kv-tile is the innermost ("arbitrary") axis.
# --------------------------------------------------------------------------
def _flash_attn_kernel(x_ref, k_ref, v_ref, wq_ref, wproj_ref, bproj_ref, o_ref,
                       q_scr, m_scr, l_scr, acc_scr, attn_scr,
                       *, num_heads, head_dim, scale):
    H, D = num_heads, head_dim
    ki = pl.program_id(2)

    # ---- per-(b, q-tile) init: q projection + online-softmax state ----------
    @pl.when(ki == 0)
    def _init():
        x = x_ref[0]                                                    # (tq, C) bf16
        q = jnp.dot(x, wq_ref[...], preferred_element_type=jnp.float32)
        q = q * (scale * _LOG2E)          # fold softmax scale + log2(e) (exp2 path)
        for h in range(H):                # once per q tile (amortized over kv steps)
            q_scr[h] = q[:, h * D:(h + 1) * D].astype(jnp.bfloat16)
        m_scr[...] = jnp.full(m_scr.shape, -jnp.inf, dtype=jnp.float32)
        l_scr[...] = jnp.zeros(l_scr.shape, dtype=jnp.float32)
        acc_scr[...] = jnp.zeros(acc_scr.shape, dtype=jnp.float32)

    # ---- attention core: heads batched, contraction on last dims ------------
    s = jnp.einsum('hnd,hmd->hnm', q_scr[...], k_ref[0],
                   preferred_element_type=jnp.float32)                  # (H, tq, tkv)

    m_prev = m_scr[...]                                                 # (H, tq, 1)
    m_new = jnp.maximum(m_prev, jnp.max(s, axis=-1, keepdims=True))
    alpha = jnp.exp2(m_prev - m_new)
    p = jnp.exp2(s - m_new)                                             # f32 in [0, 1]
    l_scr[...] = alpha * l_scr[...] + jnp.sum(p, axis=-1, keepdims=True)
    acc_scr[...] = alpha * acc_scr[...] + jnp.einsum(
        'hnm,hmd->hnd', p.astype(jnp.bfloat16), v_ref[0],
        preferred_element_type=jnp.float32)
    m_scr[...] = m_new

    # ---- finalize: normalize, reassemble (tq, C), output projection ---------
    @pl.when(ki == pl.num_programs(2) - 1)
    def _finalize():
        o = acc_scr[...] / l_scr[...]               # exact divide, once per q tile
        for h in range(H):
            attn_scr[:, h * D:(h + 1) * D] = o[h].astype(jnp.bfloat16)
        out = jnp.dot(attn_scr[...], wproj_ref[...],
                      preferred_element_type=jnp.float32) + bproj_ref[...]
        o_ref[0] = out.astype(o_ref.dtype)


def _pick_tile(n: int, target: int, multiple: int) -> int:
    """Largest divisor of n that is <= target and a multiple of `multiple`."""
    if n <= target:
        return n
    t = (target // multiple) * multiple
    while t >= multiple:
        if n % t == 0:
            return t
        t -= multiple
    for t in range(min(target, n), 7, -1):          # fall back to multiples of 8
        if n % t == 0 and t % 8 == 0:
            return t
    # TODO(synk): pad + mask sequences with no 8-aligned divisor instead of
    # falling back to the full length (could exceed VMEM for prime-ish N).
    return n


def attention_forward(x, y, wq, wkv, wproj, bproj, *, num_heads: int,
                      q_tile: int = 256, kv_tile: int = 512):
    """x: (B, N, C); y: (B, yN, C) or None (self-attention); weights (in, out)."""
    if y is None:
        y = x
    B, N, C = x.shape
    _, yN, _ = y.shape
    assert C % num_heads == 0
    H = num_heads
    D = C // H
    scale = float(D) ** -0.5

    tq = _pick_tile(N, q_tile, 16)      # bf16 sublane packing
    tkv = _pick_tile(yN, kv_tile, 128)  # lane dim of the (H, tq, tkv) score tensor

    # bf16 streamed activations + weights (halves DMA); f32 MXU accumulation.
    x_bf = x.astype(jnp.bfloat16)
    y_bf = y.astype(jnp.bfloat16)
    wq_bf = wq.astype(jnp.bfloat16)
    wk_bf = wkv[:, :C].astype(jnp.bfloat16)
    wv_bf = wkv[:, C:].astype(jnp.bfloat16)
    wproj_bf = wproj.astype(jnp.bfloat16)
    bproj2d = bproj.reshape(1, C).astype(jnp.float32)

    vmem_limit = 40 * 1024 * 1024

    # ---------------- Pass 1: K/V projection (hoisted) ----------------------
    kv_cost = pl.CostEstimate(
        flops=int(4 * B * yN * C * C),
        transcendentals=0,
        bytes_accessed=int(B * yN * C * 2 + 4 * C * C + 4 * B * H * yN * D))
    k_hm, v_hm = pl.pallas_call(
        functools.partial(_kv_proj_kernel, num_heads=H, head_dim=D),
        out_shape=(jax.ShapeDtypeStruct((B, H, yN, D), jnp.bfloat16),
                   jax.ShapeDtypeStruct((B, H, yN, D), jnp.bfloat16)),
        grid_spec=pltpu.PrefetchScalarGridSpec(
            num_scalar_prefetch=0,
            grid=(B, yN // tkv),
            in_specs=[
                pl.BlockSpec((1, tkv, C), lambda b, j: (b, j, 0)),       # y tile
                pl.BlockSpec((C, C), lambda b, j: (0, 0)),               # Wk
                pl.BlockSpec((C, C), lambda b, j: (0, 0)),               # Wv
            ],
            out_specs=(
                pl.BlockSpec((1, H, tkv, D), lambda b, j: (b, 0, j, 0)),  # K
                pl.BlockSpec((1, H, tkv, D), lambda b, j: (b, 0, j, 0)),  # V
            ),
        ),
        compiler_params=pltpu.CompilerParams(
            dimension_semantics=("parallel", "parallel"),
            vmem_limit_bytes=vmem_limit),
        cost_estimate=kv_cost,
    )(y_bf, wk_bf, wv_bf)

    # ---------------- Pass 2: flash attention -------------------------------
    n_qt = N // tq
    attn_flops = (2 * B * N * C * C                   # q projection
                  + 4 * B * H * N * yN * D            # scores + p@v
                  + 2 * B * N * C * C)                # output projection
    attn_bytes = (B * N * C * 2                       # x (bf16)
                  + n_qt * (2 * B * H * yN * D * 2)   # K+V re-read per q tile
                  + 2 * C * C * 2 + C * 4             # weights + bias
                  + B * N * C * x.dtype.itemsize)     # output
    attn_cost = pl.CostEstimate(flops=int(attn_flops),
                                transcendentals=int(B * H * N * yN),
                                bytes_accessed=int(attn_bytes))

    kernel = functools.partial(_flash_attn_kernel, num_heads=H, head_dim=D,
                               scale=scale)

    return pl.pallas_call(
        kernel,
        out_shape=jax.ShapeDtypeStruct((B, N, C), x.dtype),
        grid_spec=pltpu.PrefetchScalarGridSpec(
            num_scalar_prefetch=0,
            grid=(B, N // tq, yN // tkv),
            in_specs=[
                pl.BlockSpec((1, tq, C), lambda b, qi, ki: (b, qi, 0)),        # x tile
                pl.BlockSpec((1, H, tkv, D), lambda b, qi, ki: (b, 0, ki, 0)),  # K tile
                pl.BlockSpec((1, H, tkv, D), lambda b, qi, ki: (b, 0, ki, 0)),  # V tile
                # Constant-index weights.
                # TODO(synk): pipeline_mode=pl.Buffered(1) to single-buffer the
                # weights once that is safe on the target jax version.
                pl.BlockSpec((C, C), lambda b, qi, ki: (0, 0)),                # Wq
                pl.BlockSpec((C, C), lambda b, qi, ki: (0, 0)),                # Wproj
                pl.BlockSpec((1, C), lambda b, qi, ki: (0, 0)),                # bproj
            ],
            out_specs=pl.BlockSpec((1, tq, C), lambda b, qi, ki: (b, qi, 0)),
            scratch_shapes=[
                pltpu.VMEM((H, tq, D), jnp.bfloat16),    # q (head-major)
                pltpu.VMEM((H, tq, 1), jnp.float32),     # running max m
                pltpu.VMEM((H, tq, 1), jnp.float32),     # running sum l
                pltpu.VMEM((H, tq, D), jnp.float32),     # acc
                pltpu.VMEM((tq, C), jnp.bfloat16),       # attn reassembly
            ],
        ),
        compiler_params=pltpu.CompilerParams(
            dimension_semantics=("parallel", "parallel", "arbitrary"),
            vmem_limit_bytes=vmem_limit),
        cost_estimate=attn_cost,
    )(x_bf, k_hm, v_hm, wq_bf, wproj_bf, bproj2d)


def attention_reference(x, y, wq, wkv, wproj, bproj, *, num_heads: int):
    """Pure-JAX f32 reference mirroring the PyTorch forward (eval mode)."""
    B, N, C = x.shape
    _, yN, _ = y.shape
    D = C // num_heads
    scale = D ** (-0.5)
    q = (x @ wq).reshape(B, N, num_heads, D).transpose(0, 2, 1, 3)
    kv = (y @ wkv).reshape(B, yN, 2, num_heads, D).transpose(2, 0, 3, 1, 4)
    k, v = kv[0], kv[1]
    attn = jax.nn.softmax((q * scale) @ jnp.swapaxes(k, -2, -1), axis=-1)
    o = (attn @ v).transpose(0, 2, 1, 3).reshape(B, N, C)
    return o @ wproj + bproj


if __name__ == "__main__":
    # Small shapes consistent with the module: dim=32, num_heads=8 -> head_dim=4.
    B, N, C, H = 2, 16, 32, 8

    key = jax.random.PRNGKey(0)
    kx, ky, kwq, kwkv, kwp, kbp = jax.random.split(key, 6)

    x = jax.random.normal(kx, (B, N, C), dtype=jnp.float32)
    wq = jax.random.normal(kwq, (C, C), dtype=jnp.float32) * 0.05
    wkv = jax.random.normal(kwkv, (C, 2 * C), dtype=jnp.float32) * 0.05
    wproj = jax.random.normal(kwp, (C, C), dtype=jnp.float32) * 0.05
    bproj = jax.random.normal(kbp, (C,), dtype=jnp.float32) * 0.05

    # Self-attention (y is None in the PyTorch forward).  Small tiles force
    # multiple q tiles and multiple kv steps, exercising the online softmax.
    out = attention_forward(x, None, wq, wkv, wproj, bproj,
                            num_heads=H, q_tile=8, kv_tile=8)
    out = jax.block_until_ready(out)
    ref = attention_reference(x, x, wq, wkv, wproj, bproj, num_heads=H)
    assert out.shape == (B, N, C)
    assert jnp.allclose(out, ref, atol=5e-2, rtol=5e-2), "self-attn mismatch"

    # Cross-attention (y provided, different sequence length).
    y = jax.random.normal(ky, (B, 24, C), dtype=jnp.float32)
    out2 = attention_forward(x, y, wq, wkv, wproj, bproj,
                             num_heads=H, q_tile=8, kv_tile=8)
    out2 = jax.block_until_ready(out2)
    ref2 = attention_reference(x, y, wq, wkv, wproj, bproj, num_heads=H)
    assert jnp.allclose(out2, ref2, atol=5e-2, rtol=5e-2), "cross-attn mismatch"

    print("KERNEL_OK")
</pallas_src>

<mosaic_0001>
module attributes {stable_mosaic.version = 11 : i64} {
  func.func @_kv_proj_kernel(%arg0: i32, %arg1: i32, %arg2: memref<1x8x32xbf16, #tpu.memory_space<vmem>>, %arg3: memref<32x32xbf16, #tpu.memory_space<vmem>>, %arg4: memref<32x32xbf16, #tpu.memory_space<vmem>>, %arg5: memref<1x8x8x4xbf16, #tpu.memory_space<vmem>>, %arg6: memref<1x8x8x4xbf16, #tpu.memory_space<vmem>>) attributes {dimension_semantics = [#tpu.dimension_semantics<parallel>, #tpu.dimension_semantics<parallel>], iteration_bounds = array<i64: 2, 2>, scalar_prefetch = 0 : i64, scratch_operands = 0 : i64, tpu.core_type = #tpu.core_type<tc>, window_params = [{transform_indices = @transform_0, window_bounds = array<i64: 1, 8, 32>}, {pipeline_mode = #tpu.pipeline_mode<synchronous>, transform_indices = @transform_1, window_bounds = array<i64: 32, 32>}, {pipeline_mode = #tpu.pipeline_mode<synchronous>, transform_indices = @transform_2, window_bounds = array<i64: 32, 32>}, {transform_indices = @transform_3, window_bounds = array<i64: 1, 8, 8, 4>}, {transform_indices = @transform_4, window_bounds = array<i64: 1, 8, 8, 4>}]} {
    %c0 = arith.constant 0 : index
    %c0_0 = arith.constant 0 : index
    %c0_1 = arith.constant 0 : index
    %0 = vector.load %arg2[%c0, %c0_0, %c0_1] : memref<1x8x32xbf16, #tpu.memory_space<vmem>>, vector<1x8x32xbf16>
    %1 = vector.shape_cast %0 : vector<1x8x32xbf16> to vector<8x32xbf16>
    %c0_2 = arith.constant 0 : index
    %c0_3 = arith.constant 0 : index
    %2 = vector.load %arg3[%c0_2, %c0_3] : memref<32x32xbf16, #tpu.memory_space<vmem>>, vector<32x32xbf16>
    %cst = arith.constant dense<0.000000e+00> : vector<8x32xf32>
    %3 = tpu.matmul %1, %2, %cst {dimension_numbers = #tpu.dot_dimension_numbers<[1], [0], [0], [1], [0, 0, 1, 1], [], []>} : vector<8x32xbf16>, vector<32x32xbf16>, vector<8x32xf32> -> vector<8x32xf32>
    %c0_4 = arith.constant 0 : index
    %c0_5 = arith.constant 0 : index
    %4 = vector.load %arg4[%c0_4, %c0_5] : memref<32x32xbf16, #tpu.memory_space<vmem>>, vector<32x32xbf16>
    %cst_6 = arith.constant dense<0.000000e+00> : vector<8x32xf32>
    %5 = tpu.matmul %1, %4, %cst_6 {dimension_numbers = #tpu.dot_dimension_numbers<[1], [0], [0], [1], [0, 0, 1, 1], [], []>} : vector<8x32xbf16>, vector<32x32xbf16>, vector<8x32xf32> -> vector<8x32xf32>
    %6 = vector.extract_strided_slice %3 {offsets = [0, 0], sizes = [8, 4], strides = [1, 1]} : vector<8x32xf32> to vector<8x4xf32>
    %7 = arith.truncf %6 : vector<8x4xf32> to vector<8x4xbf16>
    %c0_7 = arith.constant 0 : index
    %c0_8 = arith.constant 0 : index
    %c0_9 = arith.constant 0 : index
    %c0_10 = arith.constant 0 : index
    %8 = vector.load %arg5[%c0_7, %c0_8, %c0_9, %c0_10] : memref<1x8x8x4xbf16, #tpu.memory_space<vmem>>, vector<1x1x8x4xbf16>
    %9 = vector.shape_cast %8 : vector<1x1x8x4xbf16> to vector<8x4xbf16>
    %10 = vector.shape_cast %7 : vector<8x4xbf16> to vector<1x1x8x4xbf16>
    tpu.vector_store %arg5[%c0_7, %c0_8, %c0_9, %c0_10], %10 {strides = array<i32>} : memref<1x8x8x4xbf16, #tpu.memory_space<vmem>>, vector<1x1x8x4xbf16>,
    %11 = vector.extract_strided_slice %5 {offsets = [0, 0], sizes = [8, 4], strides = [1, 1]} : vector<8x32xf32> to vector<8x4xf32>
    %12 = arith.truncf %11 : vector<8x4xf32> to vector<8x4xbf16>
    %c0_11 = arith.constant 0 : index
    %c0_12 = arith.constant 0 : index
    %c0_13 = arith.constant 0 : index
    %c0_14 = arith.constant 0 : index
    %13 = vector.load %arg6[%c0_11, %c0_12, %c0_13, %c0_14] : memref<1x8x8x4xbf16, #tpu.memory_space<vmem>>, vector<1x1x8x4xbf16>
    %14 = vector.shape_cast %13 : vector<1x1x8x4xbf16> to vector<8x4xbf16>
    %15 = vector.shape_cast %12 : vector<8x4xbf16> to vector<1x1x8x4xbf16>
    tpu.vector_store %arg6[%c0_11, %c0_12, %c0_13, %c0_14], %15 {strides = array<i32>} : memref<1x8x8x4xbf16, #tpu.memory_space<vmem>>, vector<1x1x8x4xbf16>,
    %16 = vector.extract_strided_slice %3 {offsets = [0, 4], sizes = [8, 4], strides = [1, 1]} : vector<8x32xf32> to vector<8x4xf32>
    %17 = arith.truncf %16 : vector<8x4xf32> to vector<8x4xbf16>
    %c0_15 = arith.constant 0 : index
    %c1 = arith.constant 1 : index
    %c0_16 = arith.constant 0 : index
    %c0_17 = arith.constant 0 : index
    %18 = vector.load %arg5[%c0_15, %c1, %c0_16, %c0_17] : memref<1x8x8x4xbf16, #tpu.memory_space<vmem>>, vector<1x1x8x4xbf16>
    %19 = vector.shape_cast %18 : vector<1x1x8x4xbf16> to vector<8x4xbf16>
    %20 = vector.shape_cast %17 : vector<8x4xbf16> to vector<1x1x8x4xbf16>
    tpu.vector_store %arg5[%c0_15, %c1, %c0_16, %c0_17], %20 {strides = array<i32>} : memref<1x8x8x4xbf16, #tpu.memory_space<vmem>>, vector<1x1x8x4xbf16>,
    %21 = vector.extract_strided_slice %5 {offsets = [0, 4], sizes = [8, 4], strides = [1, 1]} : vector<8x32xf32> to vector<8x4xf32>
    %22 = arith.truncf %21 : vector<8x4xf32> to vector<8x4xbf16>
    %c0_18 = arith.constant 0 : index
    %c1_19 = arith.constant 1 : index
    %c0_20 = arith.constant 0 : index
    %c0_21 = arith.constant 0 : index
    %23 = vector.load %arg6[%c0_18, %c1_19, %c0_20, %c0_21] : memref<1x8x8x4xbf16, #tpu.memory_space<vmem>>, vector<1x1x8x4xbf16>
    %24 = vector.shape_cast %23 : vector<1x1x8x4xbf16> to vector<8x4xbf16>
    %25 = vector.shape_cast %22 : vector<8x4xbf16> to vector<1x1x8x4xbf16>
    tpu.vector_store %arg6[%c0_18, %c1_19, %c0_20, %c0_21], %25 {strides = array<i32>} : memref<1x8x8x4xbf16, #tpu.memory_space<vmem>>, vector<1x1x8x4xbf16>,
    %26 = vector.extract_strided_slice %3 {offsets = [0, 8], sizes = [8, 4], strides = [1, 1]} : vector<8x32xf32> to vector<8x4xf32>
    %27 = arith.truncf %26 : vector<8x4xf32> to vector<8x4xbf16>
    %c0_22 = arith.constant 0 : index
    %c2 = arith.constant 2 : index
    %c0_23 = arith.constant 0 : index
    %c0_24 = arith.constant 0 : index
    %28 = vector.load %arg5[%c0_22, %c2, %c0_23, %c0_24] : memref<1x8x8x4xbf16, #tpu.memory_space<vmem>>, vector<1x1x8x4xbf16>
    %29 = vector.shape_cast %28 : vector<1x1x8x4xbf16> to vector<8x4xbf16>
    %30 = vector.shape_cast %27 : vector<8x4xbf16> to vector<1x1x8x4xbf16>
    tpu.vector_store %arg5[%c0_22, %c2, %c0_23, %c0_24], %30 {strides = array<i32>} : memref<1x8x8x4xbf16, #tpu.memory_space<vmem>>, vector<1x1x8x4xbf16>,
    %31 = vector.extract_strided_slice %5 {offsets = [0, 8], sizes = [8, 4], strides = [1, 1]} : vector<8x32xf32> to vector<8x4xf32>
    %32 = arith.truncf %31 : vector<8x4xf32> to vector<8x4xbf16>
    %c0_25 = arith.constant 0 : index
    %c2_26 = arith.constant 2 : index
    %c0_27 = arith.constant 0 : index
    %c0_28 = arith.constant 0 : index
    %33 = vector.load %arg6[%c0_25, %c2_26, %c0_27, %c0_28] : memref<1x8x8x4xbf16, #tpu.memory_space<vmem>>, vector<1x1x8x4xbf16>
    %34 = vector.shape_cast %33 : vector<1x1x8x4xbf16> to vector<8x4xbf16>
    %35 = vector.shape_cast %32 : vector<8x4xbf16> to vector<1x1x8x4xbf16>
    tpu.vector_store %arg6[%c0_25, %c2_26, %c0_27, %c0_28], %35 {strides = array<i32>} : memref<1x8x8x4xbf16, #tpu.memory_space<vmem>>, vector<1x1x8x4xbf16>,
    %36 = vector.extract_strided_slice %3 {offsets = [0, 12], sizes = [8, 4], strides = [1, 1]} : vector<8x32xf32> to vector<8x4xf32>
    %37 = arith.truncf %36 : vector<8x4xf32> to vector<8x4xbf16>
    %c0_29 = arith.constant 0 : index
    %c3 = arith.constant 3 : index
    %c0_30 = arith.constant 0 : index
    %c0_31 = arith.constant 0 : index
    %38 = vector.load %arg5[%c0_29, %c3, %c0_30, %c0_31] : memref<1x8x8x4xbf16, #tpu.memory_space<vmem>>, vector<1x1x8x4xbf16>
    %39 = vector.shape_cast %38 : vector<1x1x8x4xbf16> to vector<8x4xbf16>
    %40 = vector.shape_cast %37 : vector<8x4xbf16> to vector<1x1x8x4xbf16>
    tpu.vector_store %arg5[%c0_29, %c3, %c0_30, %c0_31], %40 {strides = array<i32>} : memref<1x8x8x4xbf16, #tpu.memory_space<vmem>>, vector<1x1x8x4xbf16>,
    %41 = vector.extract_strided_slice %5 {offsets = [0, 12], sizes = [8, 4], strides = [1, 1]} : vector<8x32xf32> to vector<8x4xf32>
    %42 = arith.truncf %41 : vector<8x4xf32> to vector<8x4xbf16>
    %c0_32 = arith.constant 0 : index
    %c3_33 = arith.constant 3 : index
    %c0_34 = arith.constant 0 : index
    %c0_35 = arith.constant 0 : index
    %43 = vector.load %arg6[%c0_32, %c3_33, %c0_34, %c0_35] : memref<1x8x8x4xbf16, #tpu.memory_space<vmem>>, vector<1x1x8x4xbf16>
    %44 = vector.shape_cast %43 : vector<1x1x8x4xbf16> to vector<8x4xbf16>
    %45 = vector.shape_cast %42 : vector<8x4xbf16> to vector<1x1x8x4xbf16>
    tpu.vector_store %arg6[%c0_32, %c3_33, %c0_34, %c0_35], %45 {strides = array<i32>} : memref<1x8x8x4xbf16, #tpu.memory_space<vmem>>, vector<1x1x8x4xbf16>,
    %46 = vector.extract_strided_slice %3 {offsets = [0, 16], sizes = [8, 4], strides = [1, 1]} : vector<8x32xf32> to vector<8x4xf32>
    %47 = arith.truncf %46 : vector<8x4xf32> to vector<8x4xbf16>
    %c0_36 = arith.constant 0 : index
    %c4 = arith.constant 4 : index
    %c0_37 = arith.constant 0 : index
    %c0_38 = arith.constant 0 : index
    %48 = vector.load %arg5[%c0_36, %c4, %c0_37, %c0_38] : memref<1x8x8x4xbf16, #tpu.memory_space<vmem>>, vector<1x1x8x4xbf16>
    %49 = vector.shape_cast %48 : vector<1x1x8x4xbf16> to vector<8x4xbf16>
    %50 = vector.shape_cast %47 : vector<8x4xbf16> to vector<1x1x8x4xbf16>
    tpu.vector_store %arg5[%c0_36, %c4, %c0_37, %c0_38], %50 {strides = array<i32>} : memref<1x8x8x4xbf16, #tpu.memory_space<vmem>>, vector<1x1x8x4xbf16>,
    %51 = vector.extract_strided_slice %5 {offsets = [0, 16], sizes = [8, 4], strides = [1, 1]} : vector<8x32xf32> to vector<8x4xf32>
    %52 = arith.truncf %51 : vector<8x4xf32> to vector<8x4xbf16>
    %c0_39 = arith.constant 0 : index
    %c4_40 = arith.constant 4 : index
    %c0_41 = arith.constant 0 : index
    %c0_42 = arith.constant 0 : index
    %53 = vector.load %arg6[%c0_39, %c4_40, %c0_41, %c0_42] : memref<1x8x8x4xbf16, #tpu.memory_space<vmem>>, vector<1x1x8x4xbf16>
    %54 = vector.shape_cast %53 : vector<1x1x8x4xbf16> to vector<8x4xbf16>
    %55 = vector.shape_cast %52 : vector<8x4xbf16> to vector<1x1x8x4xbf16>
    tpu.vector_store %arg6[%c0_39, %c4_40, %c0_41, %c0_42], %55 {strides = array<i32>} : memref<1x8x8x4xbf16, #tpu.memory_space<vmem>>, vector<1x1x8x4xbf16>,
    %56 = vector.extract_strided_slice %3 {offsets = [0, 20], sizes = [8, 4], strides = [1, 1]} : vector<8x32xf32> to vector<8x4xf32>
    %57 = arith.truncf %56 : vector<8x4xf32> to vector<8x4xbf16>
    %c0_43 = arith.constant 0 : index
    %c5 = arith.constant 5 : index
    %c0_44 = arith.constant 0 : index
    %c0_45 = arith.constant 0 : index
    %58 = vector.load %arg5[%c0_43, %c5, %c0_44, %c0_45] : memref<1x8x8x4xbf16, #tpu.memory_space<vmem>>, vector<1x1x8x4xbf16>
    %59 = vector.shape_cast %58 : vector<1x1x8x4xbf16> to vector<8x4xbf16>
    %60 = vector.shape_cast %57 : vector<8x4xbf16> to vector<1x1x8x4xbf16>
    tpu.vector_store %arg5[%c0_43, %c5, %c0_44, %c0_45], %60 {strides = array<i32>} : memref<1x8x8x4xbf16, #tpu.memory_space<vmem>>, vector<1x1x8x4xbf16>,
    %61 = vector.extract_strided_slice %5 {offsets = [0, 20], sizes = [8, 4], strides = [1, 1]} : vector<8x32xf32> to vector<8x4xf32>
    %62 = arith.truncf %61 : vector<8x4xf32> to vector<8x4xbf16>
    %c0_46 = arith.constant 0 : index
    %c5_47 = arith.constant 5 : index
    %c0_48 = arith.constant 0 : index
    %c0_49 = arith.constant 0 : index
    %63 = vector.load %arg6[%c0_46, %c5_47, %c0_48, %c0_49] : memref<1x8x8x4xbf16, #tpu.memory_space<vmem>>, vector<1x1x8x4xbf16>
    %64 = vector.shape_cast %63 : vector<1x1x8x4xbf16> to vector<8x4xbf16>
    %65 = vector.shape_cast %62 : vector<8x4xbf16> to vector<1x1x8x4xbf16>
    tpu.vector_store %arg6[%c0_46, %c5_47, %c0_48, %c0_49], %65 {strides = array<i32>} : memref<1x8x8x4xbf16, #tpu.memory_space<vmem>>, vector<1x1x8x4xbf16>,
    %66 = vector.extract_strided_slice %3 {offsets = [0, 24], sizes = [8, 4], strides = [1, 1]} : vector<8x32xf32> to vector<8x4xf32>
    %67 = arith.truncf %66 : vector<8x4xf32> to vector<8x4xbf16>
    %c0_50 = arith.constant 0 : index
    %c6 = arith.constant 6 : index
    %c0_51 = arith.constant 0 : index
    %c0_52 = arith.constant 0 : index
    %68 = vector.load %arg5[%c0_50, %c6, %c0_51, %c0_52] : memref<1x8x8x4xbf16, #tpu.memory_space<vmem>>, vector<1x1x8x4xbf16>
    %69 = vector.shape_cast %68 : vector<1x1x8x4xbf16> to vector<8x4xbf16>
    %70 = vector.shape_cast %67 : vector<8x4xbf16> to vector<1x1x8x4xbf16>
    tpu.vector_store %arg5[%c0_50, %c6, %c0_51, %c0_52], %70 {strides = array<i32>} : memref<1x8x8x4xbf16, #tpu.memory_space<vmem>>, vector<1x1x8x4xbf16>,
    %71 = vector.extract_strided_slice %5 {offsets = [0, 24], sizes = [8, 4], strides = [1, 1]} : vector<8x32xf32> to vector<8x4xf32>
    %72 = arith.truncf %71 : vector<8x4xf32> to vector<8x4xbf16>
    %c0_53 = arith.constant 0 : index
    %c6_54 = arith.constant 6 : index
    %c0_55 = arith.constant 0 : index
    %c0_56 = arith.constant 0 : index
    %73 = vector.load %arg6[%c0_53, %c6_54, %c0_55, %c0_56] : memref<1x8x8x4xbf16, #tpu.memory_space<vmem>>, vector<1x1x8x4xbf16>
    %74 = vector.shape_cast %73 : vector<1x1x8x4xbf16> to vector<8x4xbf16>
    %75 = vector.shape_cast %72 : vector<8x4xbf16> to vector<1x1x8x4xbf16>
    tpu.vector_store %arg6[%c0_53, %c6_54, %c0_55, %c0_56], %75 {strides = array<i32>} : memref<1x8x8x4xbf16, #tpu.memory_space<vmem>>, vector<1x1x8x4xbf16>,
    %76 = vector.extract_strided_slice %3 {offsets = [0, 28], sizes = [8, 4], strides = [1, 1]} : vector<8x32xf32> to vector<8x4xf32>
    %77 = arith.truncf %76 : vector<8x4xf32> to vector<8x4xbf16>
    %c0_57 = arith.constant 0 : index
    %c7 = arith.constant 7 : index
    %c0_58 = arith.constant 0 : index
    %c0_59 = arith.constant 0 : index
    %78 = vector.load %arg5[%c0_57, %c7, %c0_58, %c0_59] : memref<1x8x8x4xbf16, #tpu.memory_space<vmem>>, vector<1x1x8x4xbf16>
    %79 = vector.shape_cast %78 : vector<1x1x8x4xbf16> to vector<8x4xbf16>
    %80 = vector.shape_cast %77 : vector<8x4xbf16> to vector<1x1x8x4xbf16>
    tpu.vector_store %arg5[%c0_57, %c7, %c0_58, %c0_59], %80 {strides = array<i32>} : memref<1x8x8x4xbf16, #tpu.memory_space<vmem>>, vector<1x1x8x4xbf16>,
    %81 = vector.extract_strided_slice %5 {offsets = [0, 28], sizes = [8, 4], strides = [1, 1]} : vector<8x32xf32> to vector<8x4xf32>
    %82 = arith.truncf %81 : vector<8x4xf32> to vector<8x4xbf16>
    %c0_60 = arith.constant 0 : index
    %c7_61 = arith.constant 7 : index
    %c0_62 = arith.constant 0 : index
    %c0_63 = arith.constant 0 : index
    %83 = vector.load %arg6[%c0_60, %c7_61, %c0_62, %c0_63] : memref<1x8x8x4xbf16, #tpu.memory_space<vmem>>, vector<1x1x8x4xbf16>
    %84 = vector.shape_cast %83 : vector<1x1x8x4xbf16> to vector<8x4xbf16>
    %85 = vector.shape_cast %82 : vector<8x4xbf16> to vector<1x1x8x4xbf16>
    tpu.vector_store %arg6[%c0_60, %c7_61, %c0_62, %c0_63], %85 {strides = array<i32>} : memref<1x8x8x4xbf16, #tpu.memory_space<vmem>>, vector<1x1x8x4xbf16>,
    return
  }
  func.func @transform_0(%arg0: i32, %arg1: i32) -> (i32, i32, i32) {
    %c0_i32 = arith.constant 0 : i32
    %c0_i32_0 = arith.constant 0 : i32
    return %arg0, %arg1, %c0_i32 : i32, i32, i32
  }
  func.func @transform_1(%arg0: i32, %arg1: i32) -> (i32, i32) {
    %c0_i32 = arith.constant 0 : i32
    %c0_i32_0 = arith.constant 0 : i32
    %c0_i32_1 = arith.constant 0 : i32
    return %c0_i32, %c0_i32_0 : i32, i32
  }
  func.func @transform_2(%arg0: i32, %arg1: i32) -> (i32, i32) {
    %c0_i32 = arith.constant 0 : i32
    %c0_i32_0 = arith.constant 0 : i32
    %c0_i32_1 = arith.constant 0 : i32
    return %c0_i32, %c0_i32_0 : i32, i32
  }
  func.func @transform_3(%arg0: i32, %arg1: i32) -> (i32, i32, i32, i32) {
    %c0_i32 = arith.constant 0 : i32
    %c0_i32_0 = arith.constant 0 : i32
    %c0_i32_1 = arith.constant 0 : i32
    return %arg0, %c0_i32, %arg1, %c0_i32_0 : i32, i32, i32, i32
  }
  func.func @transform_4(%arg0: i32, %arg1: i32) -> (i32, i32, i32, i32) {
    %c0_i32 = arith.constant 0 : i32
    %c0_i32_0 = arith.constant 0 : i32
    %c0_i32_1 = arith.constant 0 : i32
    return %arg0, %c0_i32, %arg1, %c0_i32_0 : i32, i32, i32, i32
  }
}

</mosaic_0001>

<llo_original>
// kernel: tpu_custom_call.1
$region0: #{tpu_custom_call.1}
  #allocation0 [shape = 'u32[]', space=smem, size = 0x4, offset = 0x4, fixed_abs, tag = 'smem constant byte address 0x4 - core index']
  #allocation1 [shape = 'u32[72,128]{1,0:T(1,128)}', space=vmem, size = 0x9000, scoped, tag = 'internal scratch']
  %s0 = inlined_call_operand.hbm [shape: bf16[2,16,32], index: 0, kind: input, shape index: {}]
  %s1 = inlined_call_operand.hbm [shape: bf16[32,32], index: 1, kind: input, shape index: {}]
  %s2 = inlined_call_operand.hbm [shape: bf16[32,32], index: 2, kind: input, shape index: {}]
  %s3 = inlined_call_operand.vmem [shape: bf16[2,8,16,4], index: 3, kind: output, shape index: {0}]
  %s4 = inlined_call_operand.vmem [shape: bf16[2,8,16,4], index: 4, kind: output, shape index: {1}]
  %5 = xla_tuple %s3, %s4
  %s6 = sld [smem:[#allocation0]]
  $region139: #{tpu_custom_call.1} parent=0
    _
  %s8 = ssub.s32 1, %s6
  %s9 = scalar_select 0, %s8, %s6
  $region1: #{tpu_custom_call.1} parent=0
    #allocation2 [shape = 'u8[4096]{0}', space=vmem, size = 0x1000, scoped, tag = 'input window, operand 0']
    #allocation3 [shape = 's32[2]{0}', space=sflag, size = 0x8, scoped, tag = 'scoped memory for tpu_custom_call.1']
    #allocation4 [shape = 'u8[8192]{0}', space=vmem, size = 0x2000, scoped, tag = 'input window, operand 1, single buffered']
    #allocation5 [shape = 's32[1]{0}', space=sflag, size = 0x4, scoped, tag = 'scoped memory for tpu_custom_call.1']
    #allocation6 [shape = 'u8[8192]{0}', space=vmem, size = 0x2000, scoped, tag = 'input window, operand 2, single buffered']
    #allocation7 [shape = 'u8[32768]{0}', space=vmem, size = 0x8000, scoped, tag = 'output window, operand 0']
    #allocation8 [shape = 'u8[32768]{0}', space=vmem, size = 0x8000, scoped, tag = 'output window, operand 1']
    %10 = vsyncpa [#allocation3], 0
    %s11 = scalar_lea.sflag [#allocation3], 1
    %12 = vsyncpa %s11, 0
    %13 = vsyncpa [#allocation5], 0
    loop: start=0, step=1, limit=6
    $region2: #{tpu_custom_call.1} parent=1 // loop_pre_header
      _
    $region3: #{tpu_custom_call.1} parent=1 // loop_header
      %s15 = sphi 0, %s19
      %p16 = scmp.ge.s32.totalorder %s15, 6
      %s22 = sphi 0, %s34
      %s23 = sphi 0, %s30
      %s24 = sphi 0, %s22
      %s25 = sphi 0, %s23
      %s26 = sphi 0, %s24
      %s27 = sphi 0, %s25
      %s39 = sphi 0, %s41
      %s42 = sphi 0, %s39
      %s43 = sphi 0, %s42
      %s59 = sphi 0, %s43
      %s63 = sphi 0, %s63
      %s65 = sphi 0, %s63
      %s66 = sphi 0, %s65
      %s80 = sphi 0, %s66
      %s84 = sphi 0, %s84
      %s86 = sphi 0, %s84
      %s87 = sphi 0, %s86
      %s101 = sphi 0, %s87
      %s109 = sphi 0, %s111
      %s112 = sphi 0, %s109
      %s113 = sphi 0, %s112
      %s129 = sphi 0, %s113
      %s137 = sphi 0, %s139
      %s140 = sphi 0, %s137
      %s141 = sphi 0, %s140
      %s157 = sphi 0, %s141
    $region4: #{tpu_custom_call.1} parent=1 // loop_header_branch
      %18 = sbr.rel (%p16) target = $region8
    $region5: #{tpu_custom_call.1} parent=1 // loop_body
      %s20 = ssub.s32 %s15, 1
      %s21 = ssub.s32 %s15, 2
      %s28 = sadd.s32 1, %s23
      %p29 = scmp.ge.s32.totalorder %s28, 2
      %s30 = scalar_select %p29, 0, %s28
      %s31 = sadd.s32 1, %s22
      %s32 = scalar_select %p29, %s31, %s22
      %p33 = scmp.ge.s32.totalorder %s32, 2
      %s34 = scalar_select %p33, 0, %s32
      %s35 = ssub.s32 %s22, %s34
      %s36 = ssub.s32 %s23, %s30
      %s37 = sor.u32 %s35, %s36
      %p38 = scmp.eq.s32.totalorder %s37, 0
      %s40 = sadd.s32 %s39, 1
      %s41 = scalar_select %p38, %s39, %s40
      %p44 = pneg %p38
      %p45 = scmp.eq.s32.totalorder %s15, 3
      %p46 = por %p44, %p45
      %p47 = scmp.ne.s32.totalorder %s39, %s42
      %p48 = scmp.eq.s32.totalorder %s15, 0
      %p49 = por %p47, %p48
      %p50 = scmp.ne.s32.totalorder %s39, %s42
      %p51 = scmp.eq.s32.totalorder %s20, 3
      %p52 = por %p50, %p51
      %p53 = scmp.ne.s32.totalorder %s42, %s43
      %p54 = scmp.eq.s32.totalorder %s20, 0
      %p55 = por %p53, %p54
      %p56 = scmp.ne.s32.totalorder %s42, %s43
      %p57 = scmp.eq.s32.totalorder %s21, 3
      %p58 = por %p56, %p57
      %p60 = scmp.ne.s32.totalorder %s43, %s59
      %p61 = scmp.eq.s32.totalorder %s21, 0
      %p62 = por %p60, %p61
      %s64 = sadd.s32 %s63, 1
      %p67 = scmp.eq.s32.totalorder %s15, 3
      %p68 = scmp.ne.s32.totalorder %s63, %s65
      %p69 = scmp.eq.s32.totalorder %s15, 0
      %p70 = por %p68, %p69
      %p71 = scmp.ne.s32.totalorder %s63, %s65
      %p72 = scmp.eq.s32.totalorder %s20, 3
      %p73 = por %p71, %p72
      %p74 = scmp.ne.s32.totalorder %s65, %s66
      %p75 = scmp.eq.s32.totalorder %s20, 0
      %p76 = por %p74, %p75
      %p77 = scmp.ne.s32.totalorder %s65, %s66
      %p78 = scmp.eq.s32.totalorder %s21, 3
      %p79 = por %p77, %p78
      %p81 = scmp.ne.s32.totalorder %s66, %s80
      %p82 = scmp.eq.s32.totalorder %s21, 0
      %p83 = por %p81, %p82
      %s85 = sadd.s32 %s84, 1
      %p88 = scmp.eq.s32.totalorder %s15, 3
      %p89 = scmp.ne.s32.totalorder %s84, %s86
      %p90 = scmp.eq.s32.totalorder %s15, 0
      %p91 = por %p89, %p90
      %p92 = scmp.ne.s32.totalorder %s84, %s86
      %p93 = scmp.eq.s32.totalorder %s20, 3
      %p94 = por %p92, %p93
      %p95 = scmp.ne.s32.totalorder %s86, %s87
      %p96 = scmp.eq.s32.totalorder %s20, 0
      %p97 = por %p95, %p96
      %p98 = scmp.ne.s32.totalorder %s86, %s87
      %p99 = scmp.eq.s32.totalorder %s21, 3
      %p100 = por %p98, %p99
      %p102 = scmp.ne.s32.totalorder %s87, %s101
      %p103 = scmp.eq.s32.totalorder %s21, 0
      %p104 = por %p102, %p103
      %s105 = ssub.s32 %s22, %s34
      %s106 = ssub.s32 %s23, %s30
      %s107 = sor.u32 %s105, %s106
      %p108 = scmp.eq.s32.totalorder %s107, 0
      %s110 = sadd.s32 %s109, 1
      %s111 = scalar_select %p108, %s109, %s110
      %p114 = pneg %p108
      %p115 = scmp.eq.s32.totalorder %s15, 3
      %p116 = por %p114, %p115
      %p117 = scmp.ne.s32.totalorder %s109, %s112
      %p118 = scmp.eq.s32.totalorder %s15, 0
      %p119 = por %p117, %p118
      %p120 = scmp.ne.s32.totalorder %s109, %s112
      %p121 = scmp.eq.s32.totalorder %s20, 3
      %p122 = por %p120, %p121
      %p123 = scmp.ne.s32.totalorder %s112, %s113
      %p124 = scmp.eq.s32.totalorder %s20, 0
      %p125 = por %p123, %p124
      %p126 = scmp.ne.s32.totalorder %s112, %s113
      %p127 = scmp.eq.s32.totalorder %s21, 3
      %p128 = por %p126, %p127
      %p130 = scmp.ne.s32.totalorder %s113, %s129
      %p131 = scmp.eq.s32.totalorder %s21, 0
      %p132 = por %p130, %p131
      %s133 = ssub.s32 %s22, %s34
      %s134 = ssub.s32 %s23, %s30
      %s135 = sor.u32 %s133, %s134
      %p136 = scmp.eq.s32.totalorder %s135, 0
      %s138 = sadd.s32 %s137, 1
      %s139 = scalar_select %p136, %s137, %s138
      %p142 = pneg %p136
      %p143 = scmp.eq.s32.totalorder %s15, 3
      %p144 = por %p142, %p143
      %p145 = scmp.ne.s32.totalorder %s137, %s140
      %p146 = scmp.eq.s32.totalorder %s15, 0
      %p147 = por %p145, %p146
      %p148 = scmp.ne.s32.totalorder %s137, %s140
      %p149 = scmp.eq.s32.totalorder %s20, 3
      %p150 = por %p148, %p149
      %p151 = scmp.ne.s32.totalorder %s140, %s141
      %p152 = scmp.eq.s32.totalorder %s20, 0
      %p153 = por %p151, %p152
      %p154 = scmp.ne.s32.totalorder %s140, %s141
      %p155 = scmp.eq.s32.totalorder %s21, 3
      %p156 = por %p154, %p155
      %p158 = scmp.ne.s32.totalorder %s141, %s157
      %p159 = scmp.eq.s32.totalorder %s21, 0
      %p160 = por %p158, %p159
      %p161 = scmp.le.s32.totalorder 1, %s15
      %p162 = scmp.lt.s32.totalorder %s15, 5
      %p163 = pnand %p161, %p162
      %p164 = pneg %p163
      // Predicated region
      $region9: #{tpu_custom_call.1} parent=5 // pred_check
        _
      $region10: #{tpu_custom_call.1} parent=5 // pred_check_branch
        %166 = sbr.rel (%p163) target = $region12
      $region11: #{tpu_custom_call.1} parent=5 // pred_region
        %s167 = ssub.s32 %s15, 1
        // Predicated region
        $region13: #{tpu_custom_call.1} parent=11 // pred_check
          %p168 = pneg %p76
        $region14: #{tpu_custom_call.1} parent=11 // pred_check_branch
          %170 = sbr.rel (%p168) target = $region16
        $region15: #{tpu_custom_call.1} parent=11 // pred_region
          %172 = vsyncadd [#allocation5], 0
          %s173 = sshll.u32 %s1, 4
          %s174 = int_to_ptr.hbm [resolvable:$true] %s173
          %s175 = sshll.u32 [#allocation4], 4
          %s176 = int_to_ptr.vmem [resolvable:$true] %s175
          %181 = dma.hbm_to_vmem [thread:$0]  %s174, 256, %s176, [#allocation5], 64, 64, 4
        $region16: #{tpu_custom_call.1} parent=11 // pred_fallthru
          _
        // Predicated region
        $region17: #{tpu_custom_call.1} parent=11 // pred_check
          %p182 = pneg %p97
        $region18: #{tpu_custom_call.1} parent=11 // pred_check_branch
          %184 = sbr.rel (%p182) target = $region20
        $region19: #{tpu_custom_call.1} parent=11 // pred_region
          %186 = vsyncadd [#allocation5], 0
          %s187 = sshll.u32 %s2, 4
          %s188 = int_to_ptr.hbm [resolvable:$true] %s187
          %s189 = sshll.u32 [#allocation6], 4
          %s190 = int_to_ptr.vmem [resolvable:$true] %s189
          %195 = dma.hbm_to_vmem [thread:$0]  %s188, 256, %s190, [#allocation5], 64, 64, 4
        $region20: #{tpu_custom_call.1} parent=11 // pred_fallthru
          _
      $region12: #{tpu_custom_call.1} parent=5 // pred_fallthru
        _
      %p196 = scmp.lt.s32.totalorder %s15, 4
      // Predicated region
      $region21: #{tpu_custom_call.1} parent=5 // pred_check
        %p197 = pneg %p196
      $region22: #{tpu_custom_call.1} parent=5 // pred_check_branch
        %199 = sbr.rel (%p197) target = $region24
      $region23: #{tpu_custom_call.1} parent=5 // pred_region
        // Predicated region
        $region25: #{tpu_custom_call.1} parent=23 // pred_check
          %p200 = pneg %p49
        $region26: #{tpu_custom_call.1} parent=23 // pred_check_branch
          %202 = sbr.rel (%p200) target = $region28
        $region27: #{tpu_custom_call.1} parent=23 // pred_region
          %s203 = sand.u32 %s39, 1
          %s204 = scalar_lea.sflag [#allocation3], %s203
          %s205 = sand.u32 %s39, 1
          %s206 = smul.addr %s205, 4
          %s207 = scalar_lea.vmem [#allocation2], %s206
          %209 = vsyncadd %s204, 0
          %s210 = smul.addr %s22, 2
          %s211 = sadd.s32 %s23, %s210
          %s212 = smul.addr %s211, 4
          %s213 = scalar_lea.hbm %s0, %s212
          %s215 = sshll.u32 %s213, 4
          %s216 = int_to_ptr.hbm [resolvable:$true] %s215
          %s217 = sshll.u32 %s207, 4
          %s218 = int_to_ptr.vmem [resolvable:$true] %s217
          %220 = dma.hbm_to_vmem [thread:$0]  %s216, 64, %s218, %s204
        $region28: #{tpu_custom_call.1} parent=23 // pred_fallthru
          _
      $region24: #{tpu_custom_call.1} parent=5 // pred_fallthru
        _
      %p221 = scmp.le.s32.totalorder 1, %s15
      %p222 = scmp.lt.s32.totalorder %s15, 5
      %p223 = pnand %p221, %p222
      %p224 = pneg %p223
      // Predicated region
      $region29: #{tpu_custom_call.1} parent=5 // pred_check
        _
      $region30: #{tpu_custom_call.1} parent=5 // pred_check_branch
        %226 = sbr.rel (%p223) target = $region32
      $region31: #{tpu_custom_call.1} parent=5 // pred_region
        %s227 = ssub.s32 %s15, 1
        %s228 = sand.u32 %s42, 1
        %s229 = scalar_lea.sflag [#allocation3], %s228
        %s230 = sand.u32 %s42, 1
        %s231 = smul.addr %s230, 4
        %s232 = scalar_lea.vmem [#allocation2], %s231
        // Predicated region
        $region33: #{tpu_custom_call.1} parent=31 // pred_check
          %p233 = pneg %p55
        $region34: #{tpu_custom_call.1} parent=31 // pred_check_branch
          %235 = sbr.rel (%p233) target = $region36
        $region35: #{tpu_custom_call.1} parent=31 // pred_region
          %237 = dma.done %s229, 64
        $region36: #{tpu_custom_call.1} parent=31 // pred_fallthru
          _
        // Predicated region
        $region37: #{tpu_custom_call.1} parent=31 // pred_check
          %p238 = pneg %p76
        $region38: #{tpu_custom_call.1} parent=31 // pred_check_branch
          %240 = sbr.rel (%p238) target = $region40
        $region39: #{tpu_custom_call.1} parent=31 // pred_region
          %242 = dma.done [#allocation5], 256
        $region40: #{tpu_custom_call.1} parent=31 // pred_fallthru
          _
        // Predicated region
        $region41: #{tpu_custom_call.1} parent=31 // pred_check
          %p243 = pneg %p97
        $region42: #{tpu_custom_call.1} parent=31 // pred_check_branch
          %245 = sbr.rel (%p243) target = $region44
        $region43: #{tpu_custom_call.1} parent=31 // pred_region
          %247 = dma.done [#allocation5], 256
        $region44: #{tpu_custom_call.1} parent=31 // pred_fallthru
          _
        %s248 = sand.u32 %s42, 1
        %s249 = scalar_lea.sflag [#allocation3], %s248
        %s250 = sand.u32 %s42, 1
        %s251 = smul.addr %s250, 4
        %s252 = scalar_lea.vmem [#allocation2], %s251
        %p253 = pneg %p55
        %p254 = pneg %p52
        %p255 = pneg %p76
        %p256 = pneg %p73
        %p257 = pneg %p97
        %p258 = pneg %p94
        %p259 = pneg %p125
        %p260 = pneg %p122
        %s261 = sand.u32 %s112, 1
        %s262 = sand.u32 %s112, 1
        %s263 = smul.addr %s262, 32
        %s264 = scalar_lea.vmem [#allocation7], %s263
        %p265 = pneg %p153
        %p266 = pneg %p150
        %s267 = sand.u32 %s140, 1
        %s268 = sand.u32 %s140, 1
        %s269 = smul.addr %s268, 32
        %s270 = scalar_lea.vmem [#allocation8], %s269
        %v272 = vld [vmem:[%s232] sm:$0xf]
        %v273 = vld [vmem:[#allocation4] sm:$0xf]
        %v274 = vld [vmem:[#allocation4 + $0x4] sm:$0xf]
        %v275 = vld [vmem:[#allocation4 + $0x8] sm:$0xf]
        %v276 = vld [vmem:[#allocation4 + $0xc] sm:$0xf]
        %v281 = vunpack.c.l.b16 %v273
        %v282 = vunpack.c.l.b16 %v274
        %v283 = vunpack.c.l.b16 %v275
        %v284 = vunpack.c.l.b16 %v276
        %v285 = vpack.c.b16 %v282, %v281
        %v286 = vpack.c.b16 %v284, %v283
        %vm289 = vcmask 261120
        %v291 = vsel %vm289, %v272, 0
        %293 = vmatpush.bf16.msra.mxu0 0
        %294 = vmatpush.bf16.msra.mxu0 0
        %295 = vmatpush.bf16.msra.mxu0 0
        %296 = vmatpush.bf16.msra.mxu0 0
        %297 = vmatpush.bf16.msra.mxu0 0
        %298 = vmatpush.bf16.msra.mxu0 0
        %299 = vmatpush.bf16.msra.mxu0 %v286
        %300 = vmatpush.bf16.msra.mxu0 %v285
        %301 = vmatmul.bf16.gmra.mxu0 %v291
        %v302 = vpop.f32.mrf.mxu0
        %v303 = vadd.f32 0.0, %v302
        %v304 = vpop.f32.mrf.mxu0
        %305 = vdwg.mxu0
        %v306 = vld [vmem:[#allocation6] sm:$0xf]
        %v307 = vld [vmem:[#allocation6 + $0x4] sm:$0xf]
        %v308 = vld [vmem:[#allocation6 + $0x8] sm:$0xf]
        %v309 = vld [vmem:[#allocation6 + $0xc] sm:$0xf]
        %v314 = vunpack.c.l.b16 %v306
        %v315 = vunpack.c.l.b16 %v307
        %v316 = vunpack.c.l.b16 %v308
        %v317 = vunpack.c.l.b16 %v309
        %v318 = vpack.c.b16 %v315, %v314
        %v319 = vpack.c.b16 %v317, %v316
        %322 = vmatpush.bf16.msra.mxu0 0
        %323 = vmatpush.bf16.msra.mxu0 0
        %324 = vmatpush.bf16.msra.mxu0 0
        %325 = vmatpush.bf16.msra.mxu0 0
        %326 = vmatpush.bf16.msra.mxu0 0
        %327 = vmatpush.bf16.msra.mxu0 0
        %328 = vmatpush.bf16.msra.mxu0 %v319
        %329 = vmatpush.bf16.msra.mxu0 %v318
        %330 = vmatmul.bf16.gmra.mxu0 %v291
        %v331 = vpop.f32.mrf.mxu0
        %v332 = vadd.f32 0.0, %v331
        %v333 = vpop.f32.mrf.mxu0
        %334 = vdwg.mxu0
        %v335 = vpack.c.bf16 %v303, %v303
        %vm336 = vcmask 27648
        %337 = vst.msk [vmem:[%s264] sm:$0xf] %vm336, %v335
        %v338 = vpack.c.bf16 %v332, %v332
        %339 = vst.msk [vmem:[%s270] sm:$0xf] %vm336, %v338
        %341 = vrot.lane.b32.xlu0 %v335, 124
        %v342 = vpop.permute.xlu0 %341
        %s344 = scalar_lea.vmem %s264, 4 [#allocation7]
        %345 = vst.msk [vmem:[%s344] sm:$0xf] %vm336, %v342
        %347 = vrot.lane.b32.xlu0 %v338, 124
        %v348 = vpop.permute.xlu0 %347
        %s350 = scalar_lea.vmem %s270, 4 [#allocation8]
        %351 = vst.msk [vmem:[%s350] sm:$0xf] %vm336, %v348
        %352 = vrot.lane.b32.xlu0 %v335, 120
        %v353 = vpop.permute.xlu0 %352
        %s355 = scalar_lea.vmem %s264, 8 [#allocation7]
        %356 = vst.msk [vmem:[%s355] sm:$0xf] %vm336, %v353
        %357 = vrot.lane.b32.xlu0 %v338, 120
        %v358 = vpop.permute.xlu0 %357
        %s360 = scalar_lea.vmem %s270, 8 [#allocation8]
        %361 = vst.msk [vmem:[%s360] sm:$0xf] %vm336, %v358
        %362 = vrot.lane.b32.xlu0 %v335, 116
        %v363 = vpop.permute.xlu0 %362
        %s365 = scalar_lea.vmem %s264, 12 [#allocation7]
        %366 = vst.msk [vmem:[%s365] sm:$0xf] %vm336, %v363
        %367 = vrot.lane.b32.xlu0 %v338, 116
        %v368 = vpop.permute.xlu0 %367
        %s370 = scalar_lea.vmem %s270, 12 [#allocation8]
        %371 = vst.msk [vmem:[%s370] sm:$0xf] %vm336, %v368
        %372 = vrot.lane.b32.xlu0 %v335, 112
        %v373 = vpop.permute.xlu0 %372
        %s375 = scalar_lea.vmem %s264, 16 [#allocation7]
        %376 = vst.msk [vmem:[%s375] sm:$0xf] %vm336, %v373
        %377 = vrot.lane.b32.xlu0 %v338, 112
        %v378 = vpop.permute.xlu0 %377
        %s380 = scalar_lea.vmem %s270, 16 [#allocation8]
        %381 = vst.msk [vmem:[%s380] sm:$0xf] %vm336, %v378
        %382 = vrot.lane.b32.xlu0 %v335, 108
        %v383 = vpop.permute.xlu0 %382
        %s385 = scalar_lea.vmem %s264, 20 [#allocation7]
        %386 = vst.msk [vmem:[%s385] sm:$0xf] %vm336, %v383
        %387 = vrot.lane.b32.xlu0 %v338, 108
        %v388 = vpop.permute.xlu0 %387
        %s390 = scalar_lea.vmem %s270, 20 [#allocation8]
        %391 = vst.msk [vmem:[%s390] sm:$0xf] %vm336, %v388
        %392 = vrot.lane.b32.xlu0 %v335, 104
        %v393 = vpop.permute.xlu0 %392
        %s395 = scalar_lea.vmem %s264, 24 [#allocation7]
        %396 = vst.msk [vmem:[%s395] sm:$0xf] %vm336, %v393
        %397 = vrot.lane.b32.xlu0 %v338, 104
        %v398 = vpop.permute.xlu0 %397
        %s400 = scalar_lea.vmem %s270, 24 [#allocation8]
        %401 = vst.msk [vmem:[%s400] sm:$0xf] %vm336, %v398
        %402 = vrot.lane.b32.xlu0 %v335, 100
        %v403 = vpop.permute.xlu0 %402
        %s405 = scalar_lea.vmem %s264, 28 [#allocation7]
        %406 = vst.msk [vmem:[%s405] sm:$0xf] %vm336, %v403
        %407 = vrot.lane.b32.xlu0 %v338, 100
        %v408 = vpop.permute.xlu0 %407
        %s410 = scalar_lea.vmem %s270, 28 [#allocation8]
        %411 = vst.msk [vmem:[%s410] sm:$0xf] %vm336, %v408
        %s412 = sand.u32 %s112, 1
        %s413 = sand.u32 %s112, 1
        %s414 = smul.addr %s413, 32
        %s415 = scalar_lea.vmem [#allocation7], %s414
        %s416 = sand.u32 %s140, 1
        %s417 = sand.u32 %s140, 1
        %s418 = smul.addr %s417, 32
        %s419 = scalar_lea.vmem [#allocation8], %s418
        // Predicated region
        $region45: #{tpu_custom_call.1} parent=31 // pred_check
          %p420 = pneg %p122
        $region46: #{tpu_custom_call.1} parent=31 // pred_check_branch
          %422 = sbr.rel (%p420) target = $region48
        $region47: #{tpu_custom_call.1} parent=31 // pred_region
          %s423 = smul.addr %s24, 16
          %s424 = sadd.s32 %s25, %s423
          %s425 = smul.addr %s424, 4
          %s426 = scalar_lea.vmem %s3, %s425
          // Predicated region
          $region49: #{tpu_custom_call.1} parent=47 // pred_check
            _
          $region50: #{tpu_custom_call.1} parent=47 // pred_check_branch
            %428 = sbr.rel (0) target = $region52
          $region51: #{tpu_custom_call.1} parent=47 // pred_region
            // Predicated region
            $region53: #{tpu_custom_call.1} parent=51 // pred_check
              _
            $region54: #{tpu_custom_call.1} parent=51 // pred_check_branch
              %430 = sbr.rel target = $region56
            $region55: #{tpu_custom_call.1} parent=51 // pred_region
              // Predicated region
              $region68: #{tpu_custom_call.1} parent=55 // pred_check
                _
              $region69: #{tpu_custom_call.1} parent=55 // pred_check_branch
                %460 = sbr.rel (0) target = $region71
              $region70: #{tpu_custom_call.1} parent=55 // pred_region
                loop: start=0, step=1, limit=1
                $region72: #{tpu_custom_call.1} parent=70 // loop_pre_header
                  _
                $region73: #{tpu_custom_call.1} parent=70 // loop_header
                  %s462 = sphi 0, %s466
                  %p463 = scmp.ge.s32.totalorder %s462, 1
                  %s467 = sphi %s415, %s415
                  %s468 = sphi %s426, %s426
                $region74: #{tpu_custom_call.1} parent=70 // loop_header_branch
                  %465 = sbr.rel (%p463) target = $region78
                $region75: #{tpu_custom_call.1} parent=70 // loop_body
                  _
                $region76: #{tpu_custom_call.1} parent=70 // loop_footer
                  %s466 = sadd.s32 1, %s462
                $region77: #{tpu_custom_call.1} parent=70 // loop_footer_branch
                  %461 = sbr.rel target = $region73
                $region78: #{tpu_custom_call.1} parent=70 // loop_exit
                  _
                %s470 = ssub.s32 16, 1
                loop: start=0, step=1, limit=1
                $region79: #{tpu_custom_call.1} parent=70 // loop_pre_header
                  _
                $region80: #{tpu_custom_call.1} parent=70 // loop_header
                  %s472 = sphi 0, %s476
                  %p473 = scmp.ge.s32.totalorder %s472, 1
                  %s477 = sphi %s415, %s415
                  %s478 = sphi %s426, %s426
                $region81: #{tpu_custom_call.1} parent=70 // loop_header_branch
                  %475 = sbr.rel (%p473) target = $region85
                $region82: #{tpu_custom_call.1} parent=70 // loop_body
                  %v479 = vld [vmem:[%s477] sm:%s470]
                  %480 = vst [vmem:[%s478] sm:%s470] %v479
                  %v481 = vld [vmem:[%s477 + $0x4] sm:%s470]
                  %482 = vst [vmem:[%s478 + $0x8] sm:%s470] %v481
                  %v483 = vld [vmem:[%s477 + $0x8] sm:%s470]
                  %484 = vst [vmem:[%s478 + $0x10] sm:%s470] %v483
                  %v485 = vld [vmem:[%s477 + $0xc] sm:%s470]
                  %486 = vst [vmem:[%s478 + $0x18] sm:%s470] %v485
                  %v487 = vld [vmem:[%s477 + $0x10] sm:%s470]
                  %488 = vst [vmem:[%s478 + $0x20] sm:%s470] %v487
                  %v489 = vld [vmem:[%s477 + $0x14] sm:%s470]
                  %490 = vst [vmem:[%s478 + $0x28] sm:%s470] %v489
                  %v491 = vld [vmem:[%s477 + $0x18] sm:%s470]
                  %492 = vst [vmem:[%s478 + $0x30] sm:%s470] %v491
                  %v493 = vld [vmem:[%s477 + $0x1c] sm:%s470]
                  %494 = vst [vmem:[%s478 + $0x38] sm:%s470] %v493
                $region83: #{tpu_custom_call.1} parent=70 // loop_footer
                  %s476 = sadd.s32 1, %s472
                $region84: #{tpu_custom_call.1} parent=70 // loop_footer_branch
                  %471 = sbr.rel target = $region80
                $region85: #{tpu_custom_call.1} parent=70 // loop_exit
                  _
              $region71: #{tpu_custom_call.1} parent=55 // pred_fallthru
                _
            $region56: #{tpu_custom_call.1} parent=51 // pred_fallthru
              _
            // Predicated region
            $region57: #{tpu_custom_call.1} parent=51 // pred_check
              _
            $region58: #{tpu_custom_call.1} parent=51 // pred_check_branch
              %432 = sbr.rel (0) target = $region60
            $region59: #{tpu_custom_call.1} parent=51 // pred_region
              %s434 = ssub.s32 16, 1
              loop: start=0, step=1, limit=1
              $region61: #{tpu_custom_call.1} parent=59 // loop_pre_header
                _
              $region62: #{tpu_custom_call.1} parent=59 // loop_header
                %s436 = sphi 0, %s440
                %p437 = scmp.ge.s32.totalorder %s436, 1
                %s441 = sphi %s415, %s415
                %s442 = sphi %s426, %s426
              $region63: #{tpu_custom_call.1} parent=59 // loop_header_branch
                %439 = sbr.rel (%p437) target = $region67
              $region64: #{tpu_custom_call.1} parent=59 // loop_body
                %v443 = vld [vmem:[%s441] sm:%s434]
                %444 = vst [vmem:[%s442] sm:%s434] %v443
                %v445 = vld [vmem:[%s441 + $0x4] sm:%s434]
                %446 = vst [vmem:[%s442 + $0x8] sm:%s434] %v445
                %v447 = vld [vmem:[%s441 + $0x8] sm:%s434]
                %448 = vst [vmem:[%s442 + $0x10] sm:%s434] %v447
                %v449 = vld [vmem:[%s441 + $0xc] sm:%s434]
                %450 = vst [vmem:[%s442 + $0x18] sm:%s434] %v449
                %v451 = vld [vmem:[%s441 + $0x10] sm:%s434]
                %452 = vst [vmem:[%s442 + $0x20] sm:%s434] %v451
                %v453 = vld [vmem:[%s441 + $0x14] sm:%s434]
                %454 = vst [vmem:[%s442 + $0x28] sm:%s434] %v453
                %v455 = vld [vmem:[%s441 + $0x18] sm:%s434]
                %456 = vst [vmem:[%s442 + $0x30] sm:%s434] %v455
                %v457 = vld [vmem:[%s441 + $0x1c] sm:%s434]
                %458 = vst [vmem:[%s442 + $0x38] sm:%s434] %v457
              $region65: #{tpu_custom_call.1} parent=59 // loop_footer
                %s440 = sadd.s32 1, %s436
              $region66: #{tpu_custom_call.1} parent=59 // loop_footer_branch
                %435 = sbr.rel target = $region62
              $region67: #{tpu_custom_call.1} parent=59 // loop_exit
                _
            $region60: #{tpu_custom_call.1} parent=51 // pred_fallthru
              _
          $region52: #{tpu_custom_call.1} parent=47 // pred_fallthru
            _
          %495 = vnop
        $region48: #{tpu_custom_call.1} parent=31 // pred_fallthru
          _
        // Predicated region
        $region86: #{tpu_custom_call.1} parent=31 // pred_check
          %p496 = pneg %p150
        $region87: #{tpu_custom_call.1} parent=31 // pred_check_branch
          %498 = sbr.rel (%p496) target = $region89
        $region88: #{tpu_custom_call.1} parent=31 // pred_region
          %s499 = smul.addr %s24, 16
          %s500 = sadd.s32 %s25, %s499
          %s501 = smul.addr %s500, 4
          %s502 = scalar_lea.vmem %s4, %s501
          // Predicated region
          $region90: #{tpu_custom_call.1} parent=88 // pred_check
            _
          $region91: #{tpu_custom_call.1} parent=88 // pred_check_branch
            %504 = sbr.rel (0) target = $region93
          $region92: #{tpu_custom_call.1} parent=88 // pred_region
            // Predicated region
            $region94: #{tpu_custom_call.1} parent=92 // pred_check
              _
            $region95: #{tpu_custom_call.1} parent=92 // pred_check_branch
              %506 = sbr.rel target = $region97
            $region96: #{tpu_custom_call.1} parent=92 // pred_region
              // Predicated region
              $region109: #{tpu_custom_call.1} parent=96 // pred_check
                _
              $region110: #{tpu_custom_call.1} parent=96 // pred_check_branch
                %536 = sbr.rel (0) target = $region112
              $region111: #{tpu_custom_call.1} parent=96 // pred_region
                loop: start=0, step=1, limit=1
                $region113: #{tpu_custom_call.1} parent=111 // loop_pre_header
                  _
                $region114: #{tpu_custom_call.1} parent=111 // loop_header
                  %s538 = sphi 0, %s542
                  %p539 = scmp.ge.s32.totalorder %s538, 1
                  %s543 = sphi %s419, %s419
                  %s544 = sphi %s502, %s502
                $region115: #{tpu_custom_call.1} parent=111 // loop_header_branch
                  %541 = sbr.rel (%p539) target = $region119
                $region116: #{tpu_custom_call.1} parent=111 // loop_body
                  _
                $region117: #{tpu_custom_call.1} parent=111 // loop_footer
                  %s542 = sadd.s32 1, %s538
                $region118: #{tpu_custom_call.1} parent=111 // loop_footer_branch
                  %537 = sbr.rel target = $region114
                $region119: #{tpu_custom_call.1} parent=111 // loop_exit
                  _
                %s546 = ssub.s32 16, 1
                loop: start=0, step=1, limit=1
                $region120: #{tpu_custom_call.1} parent=111 // loop_pre_header
                  _
                $region121: #{tpu_custom_call.1} parent=111 // loop_header
                  %s548 = sphi 0, %s552
                  %p549 = scmp.ge.s32.totalorder %s548, 1
                  %s553 = sphi %s419, %s419
                  %s554 = sphi %s502, %s502
                $region122: #{tpu_custom_call.1} parent=111 // loop_header_branch
                  %551 = sbr.rel (%p549) target = $region126
                $region123: #{tpu_custom_call.1} parent=111 // loop_body
                  %v555 = vld [vmem:[%s553] sm:%s546]
                  %556 = vst [vmem:[%s554] sm:%s546] %v555
                  %v557 = vld [vmem:[%s553 + $0x4] sm:%s546]
                  %558 = vst [vmem:[%s554 + $0x8] sm:%s546] %v557
                  %v559 = vld [vmem:[%s553 + $0x8] sm:%s546]
                  %560 = vst [vmem:[%s554 + $0x10] sm:%s546] %v559
                  %v561 = vld [vmem:[%s553 + $0xc] sm:%s546]
                  %562 = vst [vmem:[%s554 + $0x18] sm:%s546] %v561
                  %v563 = vld [vmem:[%s553 + $0x10] sm:%s546]
                  %564 = vst [vmem:[%s554 + $0x20] sm:%s546] %v563
                  %v565 = vld [vmem:[%s553 + $0x14] sm:%s546]
                  %566 = vst [vmem:[%s554 + $0x28] sm:%s546] %v565
                  %v567 = vld [vmem:[%s553 + $0x18] sm:%s546]
                  %568 = vst [vmem:[%s554 + $0x30] sm:%s546] %v567
                  %v569 = vld [vmem:[%s553 + $0x1c] sm:%s546]
                  %570 = vst [vmem:[%s554 + $0x38] sm:%s546] %v569
                $region124: #{tpu_custom_call.1} parent=111 // loop_footer
                  %s552 = sadd.s32 1, %s548
                $region125: #{tpu_custom_call.1} parent=111 // loop_footer_branch
                  %547 = sbr.rel target = $region121
                $region126: #{tpu_custom_call.1} parent=111 // loop_exit
                  _
              $region112: #{tpu_custom_call.1} parent=96 // pred_fallthru
                _
            $region97: #{tpu_custom_call.1} parent=92 // pred_fallthru
              _
            // Predicated region
            $region98: #{tpu_custom_call.1} parent=92 // pred_check
              _
            $region99: #{tpu_custom_call.1} parent=92 // pred_check_branch
              %508 = sbr.rel (0) target = $region101
            $region100: #{tpu_custom_call.1} parent=92 // pred_region
              %s510 = ssub.s32 16, 1
              loop: start=0, step=1, limit=1
              $region102: #{tpu_custom_call.1} parent=100 // loop_pre_header
                _
              $region103: #{tpu_custom_call.1} parent=100 // loop_header
                %s512 = sphi 0, %s516
                %p513 = scmp.ge.s32.totalorder %s512, 1
                %s517 = sphi %s419, %s419
                %s518 = sphi %s502, %s502
              $region104: #{tpu_custom_call.1} parent=100 // loop_header_branch
                %515 = sbr.rel (%p513) target = $region108
              $region105: #{tpu_custom_call.1} parent=100 // loop_body
                %v519 = vld [vmem:[%s517] sm:%s510]
                %520 = vst [vmem:[%s518] sm:%s510] %v519
                %v521 = vld [vmem:[%s517 + $0x4] sm:%s510]
                %522 = vst [vmem:[%s518 + $0x8] sm:%s510] %v521
                %v523 = vld [vmem:[%s517 + $0x8] sm:%s510]
                %524 = vst [vmem:[%s518 + $0x10] sm:%s510] %v523
                %v525 = vld [vmem:[%s517 + $0xc] sm:%s510]
                %526 = vst [vmem:[%s518 + $0x18] sm:%s510] %v525
                %v527 = vld [vmem:[%s517 + $0x10] sm:%s510]
                %528 = vst [vmem:[%s518 + $0x20] sm:%s510] %v527
                %v529 = vld [vmem:[%s517 + $0x14] sm:%s510]
                %530 = vst [vmem:[%s518 + $0x28] sm:%s510] %v529
                %v531 = vld [vmem:[%s517 + $0x18] sm:%s510]
                %532 = vst [vmem:[%s518 + $0x30] sm:%s510] %v531
                %v533 = vld [vmem:[%s517 + $0x1c] sm:%s510]
                %534 = vst [vmem:[%s518 + $0x38] sm:%s510] %v533
              $region106: #{tpu_custom_call.1} parent=100 // loop_footer
                %s516 = sadd.s32 1, %s512
              $region107: #{tpu_custom_call.1} parent=100 // loop_footer_branch
                %511 = sbr.rel target = $region103
              $region108: #{tpu_custom_call.1} parent=100 // loop_exit
                _
            $region101: #{tpu_custom_call.1} parent=92 // pred_fallthru
              _
          $region93: #{tpu_custom_call.1} parent=88 // pred_fallthru
            _
          %571 = vnop
        $region89: #{tpu_custom_call.1} parent=31 // pred_fallthru
          _
      $region32: #{tpu_custom_call.1} parent=5 // pred_fallthru
        _
      %p572 = scmp.le.s32.totalorder 2, %s15
      // Predicated region
      $region127: #{tpu_custom_call.1} parent=5 // pred_check
        %p573 = pneg %p572
      $region128: #{tpu_custom_call.1} parent=5 // pred_check_branch
        %575 = sbr.rel (%p573) target = $region130
      $region129: #{tpu_custom_call.1} parent=5 // pred_region
        %s576 = ssub.s32 %s15, 2
        // Predicated region
        $region131: #{tpu_custom_call.1} parent=129 // pred_check
          %p577 = pneg %p128
        $region132: #{tpu_custom_call.1} parent=129 // pred_check_branch
          %579 = sbr.rel (%p577) target = $region134
        $region133: #{tpu_custom_call.1} parent=129 // pred_region
          %s580 = sand.u32 %s113, 1
          %s581 = sand.u32 %s113, 1
          %s582 = smul.addr %s581, 32
          %s583 = scalar_lea.vmem [#allocation7], %s582
        $region134: #{tpu_custom_call.1} parent=129 // pred_fallthru
          _
        // Predicated region
        $region135: #{tpu_custom_call.1} parent=129 // pred_check
          %p584 = pneg %p156
        $region136: #{tpu_custom_call.1} parent=129 // pred_check_branch
          %586 = sbr.rel (%p584) target = $region138
        $region137: #{tpu_custom_call.1} parent=129 // pred_region
          %s587 = sand.u32 %s141, 1
          %s588 = sand.u32 %s141, 1
          %s589 = smul.addr %s588, 32
          %s590 = scalar_lea.vmem [#allocation8], %s589
        $region138: #{tpu_custom_call.1} parent=129 // pred_fallthru
          _
      $region130: #{tpu_custom_call.1} parent=5 // pred_fallthru
        _
    $region6: #{tpu_custom_call.1} parent=1 // loop_footer
      %s19 = sadd.s32 1, %s15
    $region7: #{tpu_custom_call.1} parent=1 // loop_footer_branch
      %14 = sbr.rel target = $region3
    $region8: #{tpu_custom_call.1} parent=1 // loop_exit
      _
    %591 = vsyncpa [#allocation3], 1
    %s592 = scalar_lea.sflag [#allocation3], 1
    %593 = vsyncpa %s592, 1
    %594 = vsyncpa [#allocation5], 1

</llo_original>
